<compile_context>
chip_gen: v7x
topology: tpu7x:2x2x1
jax: 0.10.0
libtpu: 0.0.40
codegen_flags: <defaults>
</compile_context>

<pallas_src>
import functools

import jax
import jax.numpy as jnp
from jax.experimental import pallas as pl
from jax.experimental.pallas import tpu as pltpu


_LANE = 128
_LANE_CANDIDATES = (1024, 512, 256, 128)
_VMEM_LIMIT_BYTES = 40 * 1024 * 1024


def _shift_clip_kernel(x_ref, o_ref, *, shift, clip):
    # Arithmetic right shift on int32 (matches torch `>>` on signed ints),
    # then clamp to [-(clip+1), clip].  Truncating shift, as in the module.
    shifted = x_ref[...] >> shift
    clipped = jnp.clip(shifted, jnp.int32(-(clip + 1)), jnp.int32(clip))
    o_ref[...] = clipped.astype(o_ref.dtype)


def _shift_clip_jnp(x, shift, clip):
    x = x.astype(jnp.int32)
    return jnp.clip(x >> shift, -(clip + 1), clip)


def _round_up(a, b):
    return ((a + b - 1) // b) * b


def _pick_lane_cols(n):
    for c in _LANE_CANDIDATES:
        if n % c == 0:
            return c
    raise AssertionError("n must be a multiple of 128 here")


def _pick_block_rows(rows, lane_cols, sub, max_block_bytes):
    """Rows per block: big enough to amortize the ~0.35us per-step overhead,
    small enough to give >=4 grid steps (pipelining + megacore sharding) and
    keep the double-buffered VMEM footprint modest."""
    if rows < 4 * sub:
        # Tiny input: one full-extent block (exempt from (8,128) divisibility);
        # pipelining buys nothing here.
        return rows
    max_br = max(sub, (max_block_bytes // (lane_cols * 4)) // sub * sub)
    br = _round_up(pl.cdiv(rows, 6), sub)          # aim for ~4-8 grid steps
    return min(br, max_br, rows)


def _shift_clip_2d(x2d, out_shift, out_bound, out_dtype, max_block_bytes,
                   donate_input):
    rows, lane_cols = x2d.shape
    out_bytes = jnp.dtype(out_dtype).itemsize
    # int32 needs (8,128) blocks, int16 (16,128), int8 (32,128).
    sub = max(8, 32 // out_bytes)
    br = _pick_block_rows(rows, lane_cols, sub, max_block_bytes)
    grid = (pl.cdiv(rows, br),)

    kernel = functools.partial(_shift_clip_kernel,
                               shift=out_shift, clip=out_bound)
    n = rows * lane_cols
    cost = pl.CostEstimate(flops=3 * n, transcendentals=0,
                           bytes_accessed=n * (4 + out_bytes))
    aliases = {}
    if donate_input and jnp.dtype(out_dtype) == jnp.dtype(jnp.int32):
        aliases = {0: 0}

    return pl.pallas_call(
        kernel,
        out_shape=jax.ShapeDtypeStruct((rows, lane_cols), out_dtype),
        grid=grid,
        in_specs=[pl.BlockSpec((br, lane_cols), lambda i: (i, 0))],
        out_specs=pl.BlockSpec((br, lane_cols), lambda i: (i, 0)),
        compiler_params=pltpu.CompilerParams(
            dimension_semantics=("parallel",),
            vmem_limit_bytes=_VMEM_LIMIT_BYTES),
        cost_estimate=cost,
        input_output_aliases=aliases,
    )(x2d)


def shift_clip(x, out_shift, out_bound, *, out_dtype=jnp.int32,
               max_block_bytes=4 << 20, donate_input=False):
    """Pallas TPU version of shift_clip.forward.

    x: integer array, any shape (e.g. NCHW).
    out_shift: python int in [0, 31], right-shift amount.
    out_bound: python int >= 0, clamp to [-(out_bound+1), out_bound].
    out_dtype: opt-in narrow output (int8/int16) when out_bound fits; default
               int32 (same semantics as the PyTorch module).
    """
    out_shift = int(out_shift)
    out_bound = int(out_bound)
    assert 0 <= out_shift < 32, "out_shift must be in [0, 31]"
    assert out_bound >= 0, "out_bound must be non-negative"
    out_dtype = jnp.dtype(out_dtype)
    if out_dtype != jnp.dtype(jnp.int32):
        info = jnp.iinfo(out_dtype)
        assert -(out_bound + 1) >= info.min and out_bound <= info.max, \
            "out_dtype too narrow for the clamp range"

    orig_shape = x.shape
    flat = x.astype(jnp.int32).reshape(-1)
    n = flat.shape[0]
    if n == 0:
        return jnp.zeros(orig_shape, out_dtype)

    n_main = (n // _LANE) * _LANE
    if n_main == 0:
        # Fewer than 128 elements: not worth a kernel launch.
        return _shift_clip_jnp(flat, out_shift, out_bound).astype(
            out_dtype).reshape(orig_shape)

    if n_main == n:
        # Lane-aligned fast path (the common conv-activation case): a pure
        # reshape (bitcast), no extra HBM traffic outside the kernel.
        lane_cols = _pick_lane_cols(n)
        x2d = flat.reshape(n // lane_cols, lane_cols)
        out2d = _shift_clip_2d(x2d, out_shift, out_bound, out_dtype,
                               max_block_bytes, donate_input)
        return out2d.reshape(orig_shape)

    # Ragged size: kernel on the 128-aligned prefix, trivial (<128 element)
    # tail in plain XLA, one concatenate to stitch.  No full-tensor pad/slice.
    main, tail = flat[:n_main], flat[n_main:]
    lane_cols = _pick_lane_cols(n_main)
    out_main = _shift_clip_2d(main.reshape(n_main // lane_cols, lane_cols),
                              out_shift, out_bound, out_dtype,
                              max_block_bytes, donate_input)
    out_tail = _shift_clip_jnp(tail, out_shift, out_bound).astype(out_dtype)
    return jnp.concatenate([out_main.reshape(-1), out_tail]).reshape(orig_shape)


def shift_clip_ref(x, out_shift, out_bound):
    """Pure-JAX reference matching the PyTorch forward."""
    return _shift_clip_jnp(x, out_shift, out_bound)


if __name__ == "__main__":
    # Layer(28, 32, 192, 28, 1, 1, 1, 1, 0, 8, 8, 4):
    #   in_prec (i) = 8, out_prec (o) = 8 -> out_bound = 2**(o-1) - 1 = 127
    key = jax.random.PRNGKey(0)
    k0, k1, k2, k3 = jax.random.split(key, 4)

    in_prec = 8
    out_shift = 2                   # nonzero so the shift path is exercised
    out_bound = 2 ** (8 - 1) - 1    # 127

    # 1) Small NCHW activation (2048 elems, lane-aligned, single full block).
    x = jax.random.randint(k0, (2, 4, 16, 16), 0, 2 ** in_prec - 1,
                           dtype=jnp.int32)
    out = jax.block_until_ready(shift_clip(x, out_shift, out_bound))
    ref = shift_clip_ref(x, out_shift, out_bound)
    assert out.shape == x.shape and out.dtype == jnp.int32
    assert bool(jnp.all(out == ref))

    # 2) The module's actual activation shape (1, 32, 28, 28) = 25088 elems:
    #    lane_cols=512, rows=49 -> multi-step grid with a partial tail block.
    #    Wide accumulator-like values so the clamp is exercised.
    x2 = jax.random.randint(k1, (1, 32, 28, 28), -(2 ** 20), 2 ** 20,
                            dtype=jnp.int32)
    out2 = jax.block_until_ready(shift_clip(x2, 4, out_bound))
    ref2 = shift_clip_ref(x2, 4, out_bound)
    assert out2.shape == x2.shape and bool(jnp.all(out2 == ref2))

    # 3) Ragged size (1155 elements) with negatives -> exercises the
    #    prefix-kernel + plain-JAX-tail path and arithmetic-shift semantics.
    x3 = jax.random.randint(k2, (3, 5, 7, 11), -(2 ** 7), 2 ** 7,
                            dtype=jnp.int32)
    out3 = jax.block_until_ready(shift_clip(x3, out_shift, out_bound))
    ref3 = shift_clip_ref(x3, out_shift, out_bound)
    assert out3.shape == x3.shape and bool(jnp.all(out3 == ref3))

    # 4) Opt-in int8 output (out_bound=127 fits) on a multi-block grid:
    #    (1, 32, 64, 64) = 131072 elems -> rows=128, int8 blocks of (32, 1024).
    x4 = jax.random.randint(k3, (1, 32, 64, 64), -(2 ** 15), 2 ** 15,
                            dtype=jnp.int32)
    out4 = jax.block_until_ready(
        shift_clip(x4, out_shift, out_bound, out_dtype=jnp.int8))
    ref4 = shift_clip_ref(x4, out_shift, out_bound).astype(jnp.int8)
    assert out4.shape == x4.shape and out4.dtype == jnp.int8
    assert bool(jnp.all(out4 == ref4))

    print("KERNEL_OK")
</pallas_src>

<mosaic_0001>
module attributes {stable_mosaic.version = 11 : i64} {
  func.func @_shift_clip_kernel(%arg0: i32, %arg1: memref<2x1024xi32, #tpu.memory_space<vmem>>, %arg2: memref<2x1024xi32, #tpu.memory_space<vmem>>) attributes {dimension_semantics = [#tpu.dimension_semantics<parallel>], iteration_bounds = array<i64: 1>, scalar_prefetch = 0 : i64, scratch_operands = 0 : i64, tpu.core_type = #tpu.core_type<tc>, window_params = [{transform_indices = @transform_0, window_bounds = array<i64: 2, 1024>}, {transform_indices = @transform_1, window_bounds = array<i64: 2, 1024>}]} {
    %c0 = arith.constant 0 : index
    %c0_0 = arith.constant 0 : index
    %0 = vector.load %arg1[%c0, %c0_0] : memref<2x1024xi32, #tpu.memory_space<vmem>>, vector<2x1024xi32>
    %c2_i32 = arith.constant 2 : i32
    %1 = vector.broadcast %c2_i32 : i32 to vector<2x1024xi32>
    %2 = arith.shrsi %0, %1 : vector<2x1024xi32>
    %c-128_i32 = arith.constant -128 : i32
    %c127_i32 = arith.constant 127 : i32
    %3 = vector.broadcast %c-128_i32 : i32 to vector<2x1024xi32>
    %4 = arith.maxsi %3, %2 : vector<2x1024xi32>
    %5 = vector.broadcast %c127_i32 : i32 to vector<2x1024xi32>
    %6 = arith.minsi %5, %4 : vector<2x1024xi32>
    %c0_1 = arith.constant 0 : index
    %c0_2 = arith.constant 0 : index
    %7 = vector.load %arg2[%c0_1, %c0_2] : memref<2x1024xi32, #tpu.memory_space<vmem>>, vector<2x1024xi32>
    tpu.vector_store %arg2[%c0_1, %c0_2], %6 {strides = array<i32>} : memref<2x1024xi32, #tpu.memory_space<vmem>>, vector<2x1024xi32>,
    return
  }
  func.func @transform_0(%arg0: i32) -> (i32, i32) {
    %c0_i32 = arith.constant 0 : i32
    %c0_i32_0 = arith.constant 0 : i32
    return %arg0, %c0_i32 : i32, i32
  }
  func.func @transform_1(%arg0: i32) -> (i32, i32) {
    %c0_i32 = arith.constant 0 : i32
    %c0_i32_0 = arith.constant 0 : i32
    return %arg0, %c0_i32 : i32, i32
  }
}

</mosaic_0001>

<llo_original>
// kernel: tpu_custom_call.1
$region0: #{tpu_custom_call.1}
  #allocation0 [shape = 'u32[]', space=smem, size = 0x4, offset = 0x4, fixed_abs, tag = 'smem constant byte address 0x4 - core index']
  #allocation1 [shape = 'u32[144,128]{1,0:T(1,128)}', space=vmem, size = 0x12000, scoped, tag = 'internal scratch']
  %s0 = inlined_call_operand.hbm [shape: s32[2,1024], index: 0, kind: input, shape index: {}]
  %s1 = inlined_call_operand.hbm [shape: s32[2,1024], index: 1, kind: output, shape index: {}]
  %s2 = sld [smem:[#allocation0]]
  $region18: #{tpu_custom_call.1} parent=0
    _
  %s4 = ssub.s32 1, %s2
  %s5 = scalar_select 0, %s4, %s2
  $region1: #{tpu_custom_call.1} parent=0
    #allocation2 [shape = 'u8[8192]{0}', space=vmem, size = 0x2000, scoped, tag = 'input window, operand 0, single buffered']
    #allocation3 [shape = 's32[1]{0}', space=sflag, size = 0x4, scoped, tag = 'scoped memory for tpu_custom_call.1']
    #allocation4 [shape = 's32[1]{0}', space=sflag, size = 0x4, scoped, tag = 'scoped memory for tpu_custom_call.1']
    #allocation5 [shape = 'u8[8192]{0}', space=vmem, size = 0x2000, scoped, tag = 'output window, operand 0, single buffered']
    %6 = vsyncpa [#allocation3], 0
    %7 = vsyncpa [#allocation4], 0
    // Predicated region
    $region2: #{tpu_custom_call.1} parent=1 // pred_check
      _
    $region3: #{tpu_custom_call.1} parent=1 // pred_check_branch
      %9 = sbr.rel (0) target = $region5
    $region4: #{tpu_custom_call.1} parent=1 // pred_region
      %s11 = ssub.s32 256, 256
      %12 = vsyncadd [#allocation3], %s11
      %s14 = sshll.u32 [#allocation2], 4
      %s15 = int_to_ptr.vmem [resolvable:$true] %s14
      %17 = dma.hbm_to_vmem [thread:$0]  %s0, 256, %s15, [#allocation3]
    $region5: #{tpu_custom_call.1} parent=1 // pred_fallthru
      _
    // Predicated region
    $region6: #{tpu_custom_call.1} parent=1 // pred_check
      _
    $region7: #{tpu_custom_call.1} parent=1 // pred_check_branch
      %19 = sbr.rel (0) target = $region9
    $region8: #{tpu_custom_call.1} parent=1 // pred_region
      %20 = dma.done [#allocation3], 256
    $region9: #{tpu_custom_call.1} parent=1 // pred_fallthru
      _
    %v21 = vld [vmem:[#allocation2] sm:$0xff]
    %v22 = vld [vmem:[#allocation2 + $0x8] sm:$0xff]
    %v23 = vshra.s32 %v21, 2
    %v24 = vshra.s32 %v22, 2
    %vm25 = vcmp.gt.s32.totalorder %v23, 4294967168
    %v26 = vsel %vm25, %v23, 4294967168
    %vm27 = vcmp.gt.s32.totalorder %v24, 4294967168
    %v28 = vsel %vm27, %v24, 4294967168
    %vm29 = vcmp.lt.s32.totalorder %v26, 127
    %v30 = vsel %vm29, %v26, 127
    %vm31 = vcmp.lt.s32.totalorder %v28, 127
    %v32 = vsel %vm31, %v28, 127
    %33 = vst [vmem:[#allocation5] sm:$0xff] %v30
    %34 = vst [vmem:[#allocation5 + $0x8] sm:$0xff] %v32
    // Predicated region
    $region10: #{tpu_custom_call.1} parent=1 // pred_check
      _
    $region11: #{tpu_custom_call.1} parent=1 // pred_check_branch
      %36 = sbr.rel (0) target = $region13
    $region12: #{tpu_custom_call.1} parent=1 // pred_region
      %s38 = ssub.s32 256, 256
      %39 = vsyncadd [#allocation4], %s38
      %s41 = sshll.u32 [#allocation5], 4
      %s42 = int_to_ptr.vmem [resolvable:$true] %s41
      %44 = dma.vmem_to_hbm [thread:$0]  %s42, 256, %s1, [#allocation4]
    $region13: #{tpu_custom_call.1} parent=1 // pred_fallthru
      _
    // Predicated region
    $region14: #{tpu_custom_call.1} parent=1 // pred_check
      _
    $region15: #{tpu_custom_call.1} parent=1 // pred_check_branch
      %46 = sbr.rel (0) target = $region17
    $region16: #{tpu_custom_call.1} parent=1 // pred_region
      %47 = dma.done [#allocation4], 256
    $region17: #{tpu_custom_call.1} parent=1 // pred_fallthru
      _
    %48 = vsyncpa [#allocation3], 1
    %49 = vsyncpa [#allocation4], 1

</llo_original>
